<compile_context>
chip_gen: v7x
topology: tpu7x:2x2x1
jax: 0.10.0
libtpu: 0.0.40
codegen_flags: <defaults>
</compile_context>

<pallas_src>
import functools

import jax
import jax.numpy as jnp
from jax import lax
from jax.experimental import pallas as pl
from jax.experimental.pallas import tpu as pltpu


def _round_up(a, b):
    return ((a + b - 1) // b) * b


def _vmem_capacity_bytes():
    """Physical VMEM per TensorCore (sizes tiles and vmem_limit_bytes).

    Falls back to the v7x floor (64 MiB) if the query is unavailable; v5e/v6e
    report 128 MiB and therefore get larger limits / tiles.
    """
    try:
        info = pltpu.get_tpu_info()
        cap = int(getattr(info, "vmem_capacity_bytes", 0))
        if cap > 0:
            return cap
    except Exception:
        pass
    return 64 * 1024 * 1024


def _pick_tiles(m, n, d_pad, x_bytes, vmem_limit_bytes):
    """Pick (tr, tc): tc lane-dense (multiple of 128, <=1024), tr a multiple of
    32 (f32/bf16/int8 sublane safe, <=512), sized so the two double-buffered
    feature tiles fill roughly half the VMEM limit."""
    budget = vmem_limit_bytes // 2
    rows_max = max(budget // (2 * d_pad * x_bytes), 160)   # tr + tc combined
    tc = min(1024, _round_up(n, 128),
             max(128, ((2 * rows_max // 3) // 128) * 128))
    tr = min(512, max(32, ((rows_max - tc) // 32) * 32), _round_up(m, 32))
    tr = max(32, tr)
    # v7x megacore: the row axis is "parallel" across 2 TensorCores -- make
    # sure it has at least two tiles whenever the anchor count allows it.
    if _round_up(m, tr) == tr and m > 32:
        tr = max(32, _round_up((m + 1) // 2, 32))
    return tr, tc


def _lane_sum(tile, tc):
    """(tr, tc) -> (tr, 128) partial sums over 128-wide lane groups.

    Lane-aligned static slices + VPU adds only; the cross-lane XLU reduction
    is deferred to the once-per-row-tile epilogue.
    """
    acc = tile[:, 0:128]
    for k in range(1, tc // 128):
        acc = acc + tile[:, k * 128:(k + 1) * 128]
    return acc


def _dist_rowsum_kernel(xr_ref, xc_ref, sqr_ref, sqc_ref, s_ref, acc,
                        *, n_valid, n_pad_cols, tr, tc):
    """Pass 1 (is_code only): s[i] = sum_j dist[i, j] over valid columns.

    The diagonal (reference value exactly 0) is excluded, which also removes
    the tiny bf16-induced nonzero self-distance.
    """
    i = pl.program_id(0)
    j = pl.program_id(1)

    @pl.when(j == 0)
    def _():
        acc[...] = jnp.zeros_like(acc)

    gram = lax.dot_general(
        xr_ref[...], xc_ref[...],
        dimension_numbers=(((1,), (1,)), ((), ())),
        preferred_element_type=jnp.float32)                      # [tr, tc] f32
    d2 = jnp.maximum(sqr_ref[...] + sqc_ref[...] - 2.0 * gram, 0.0)
    dist = jnp.sqrt(d2)

    row0 = i * tr
    col0 = j * tc
    hits_diag = jnp.logical_and(col0 < row0 + tr, row0 < col0 + tc)
    if n_pad_cols > n_valid:
        need_mask = jnp.logical_or(hits_diag, j == pl.num_programs(1) - 1)
    else:
        need_mask = hits_diag

    @pl.when(need_mask)
    def _():
        grow = row0 + lax.broadcasted_iota(jnp.int32, (tr, 1), 0)
        gcol = col0 + lax.broadcasted_iota(jnp.int32, (1, tc), 1)
        keep = jnp.logical_and(gcol < n_valid, grow != gcol)
        acc[...] += _lane_sum(jnp.where(keep, dist, 0.0), tc)

    @pl.when(jnp.logical_not(need_mask))
    def _():
        acc[...] += _lane_sum(dist, tc)

    @pl.when(j == pl.num_programs(1) - 1)
    def _():
        s_ref[...] = jnp.sum(acc[...], axis=1, keepdims=True)


def _supcon_main_kernel(*refs, neg_inv_temp, scale, n_valid, n_pad_cols,
                        tr, tc, use_mask_input, is_code):
    idx = 0
    xr_ref = refs[idx]; idx += 1
    xc_ref = refs[idx]; idx += 1
    sqr_ref = refs[idx]; idx += 1
    sqc_ref = refs[idx]; idx += 1
    if use_mask_input:
        mask_ref = refs[idx]; idx += 1
        labr_ref = labc_ref = None
    else:
        mask_ref = None
        labr_ref = refs[idx]; idx += 1
        labc_ref = refs[idx]; idx += 1
    sinv_ref = None
    if is_code:
        sinv_ref = refs[idx]; idx += 1
    out_ref = refs[idx]
    s_exp, s_pl, s_p = refs[idx + 1], refs[idx + 2], refs[idx + 3]

    i = pl.program_id(0)
    j = pl.program_id(1)

    @pl.when(j == 0)
    def _():
        s_exp[...] = jnp.zeros_like(s_exp)
        s_pl[...] = jnp.zeros_like(s_pl)
        s_p[...] = jnp.zeros_like(s_p)

    # Pairwise euclidean distance tile via ||a||^2 + ||b||^2 - 2 a.b; feature
    # axis contracted directly (bf16 MXU path with f32 accumulation).
    gram = lax.dot_general(
        xr_ref[...], xc_ref[...],
        dimension_numbers=(((1,), (1,)), ((), ())),
        preferred_element_type=jnp.float32)                      # [tr, tc] f32
    d2 = jnp.maximum(sqr_ref[...] + sqc_ref[...] - 2.0 * gram, 0.0)
    dist = jnp.sqrt(d2)

    # logits = -dist / temperature (is_code: additionally scaled by the
    # per-COLUMN reciprocal row-sum, precomputed in pass 1).  Row-max
    # subtraction is dropped: log-softmax is shift invariant and the
    # reference max is the zero self-distance, so results are identical.
    if is_code:
        logits = dist * (neg_inv_temp * sinv_ref[...])
    else:
        logits = dist * neg_inv_temp

    def pos_base():
        if use_mask_input:
            return mask_ref[...].astype(jnp.float32)
        return jnp.where(labr_ref[...] == labc_ref[...], 1.0, 0.0)

    # Only tiles intersecting the diagonal (or containing padded tail columns)
    # pay for the iota / compare / select mask work.
    row0 = i * tr
    col0 = j * tc
    hits_diag = jnp.logical_and(col0 < row0 + tr, row0 < col0 + tc)
    if n_pad_cols > n_valid:
        need_mask = jnp.logical_or(hits_diag, j == pl.num_programs(1) - 1)
    else:
        need_mask = hits_diag

    @pl.when(need_mask)
    def _():
        grow = row0 + lax.broadcasted_iota(jnp.int32, (tr, 1), 0)
        gcol = col0 + lax.broadcasted_iota(jnp.int32, (1, tc), 1)
        keep = jnp.logical_and(gcol < n_valid, grow != gcol)    # pad + diag
        lmask = jnp.where(keep, 1.0, 0.0)
        pmask = pos_base() * lmask
        e = jnp.exp(logits) * lmask
        s_exp[...] += _lane_sum(e, tc)
        s_pl[...] += _lane_sum(pmask * logits, tc)
        s_p[...] += _lane_sum(pmask, tc)

    @pl.when(jnp.logical_not(need_mask))
    def _():
        pmask = pos_base()
        e = jnp.exp(logits)
        s_exp[...] += _lane_sum(e, tc)
        s_pl[...] += _lane_sum(pmask * logits, tc)
        s_p[...] += _lane_sum(pmask, tc)

    @pl.when(j == pl.num_programs(1) - 1)
    def _():
        tot_e = jnp.sum(s_exp[...], axis=1, keepdims=True)
        tot_pl = jnp.sum(s_pl[...], axis=1, keepdims=True)
        cnt = jnp.sum(s_p[...], axis=1, keepdims=True)
        # sum(pos*log_prob) = sum(pos*logits) - cnt*log(sum(exp*lmask));
        # anchors with zero positives give 0/0 = NaN, matching PyTorch.
        mean_log_prob_pos = (tot_pl - cnt * jnp.log(tot_e)) / cnt
        out_ref[...] = (-scale) * mean_log_prob_pos


def supcon_loss(features, labels=None, mask=None, *, temperature=0.07,
                contrast_mode='all', base_temperature=0.07, is_code=False,
                use_bf16_gram=True):
    """JAX/Pallas equivalent of SupConLoss.forward.

    use_bf16_gram=True streams features in bf16 for the Gram matmul (f32 MXU
    accumulation); results differ from the f32 path at roughly the 1e-3
    relative level.  Set False for strict f32 numerics.
    """
    if features.ndim < 3:
        raise ValueError('`features` needs to be [bsz, n_views, ...]')
    bsz, n_views = features.shape[0], features.shape[1]
    feats = features.reshape(bsz, n_views, -1)
    D = feats.shape[-1]

    if labels is not None and mask is not None:
        raise ValueError('Cannot define both `labels` and `mask`')
    if contrast_mode not in ('all', 'one'):
        raise ValueError('Unknown mode: {}'.format(contrast_mode))
    if is_code and contrast_mode != 'all':
        # PyTorch's broadcast in the is_code branch only works when M == N.
        raise ValueError("is_code=True requires contrast_mode='all'")

    # contrast_feature = torch.cat(torch.unbind(features, dim=1), dim=0)
    cf = jnp.concatenate([feats[:, v, :] for v in range(n_views)], axis=0)
    N = n_views * bsz
    M = N if contrast_mode == 'all' else bsz       # anchors: all rows / view 0

    d_pad = max(128, _round_up(D, 128))
    x_dtype = jnp.bfloat16 if use_bf16_gram else jnp.float32
    x_bytes = 2 if use_bf16_gram else 4

    vmem_cap = _vmem_capacity_bytes()
    vmem_limit = int(vmem_cap * 0.85)               # headroom (esp. v7x: 64 MiB)
    tr, tc = _pick_tiles(M, N, d_pad, x_bytes, vmem_limit)

    n_pad = _round_up(N, tc)
    m_pad = _round_up(M, tr)
    R = max(n_pad, m_pad)                           # row extent of the padded x

    # Zero-padding never changes dot products or norms.
    cf32 = cf.astype(jnp.float32)
    x32 = jnp.zeros((R, d_pad), jnp.float32).at[:N, :D].set(cf32)
    x = x32.astype(x_dtype)                         # streamed matrix (bf16/f32)
    sq = jnp.sum(x32 * x32, axis=-1)                # squared norms in f32
    sq_row = sq.reshape(R, 1)
    sq_col = sq[:n_pad].reshape(1, n_pad)

    use_mask_input = mask is not None
    if not use_mask_input:
        if labels is None:
            base_lab = jnp.arange(bsz, dtype=jnp.int32)     # SimCLR: eye mask
        else:
            base_lab = jnp.asarray(labels).reshape(-1).astype(jnp.int32)
            if base_lab.shape[0] != bsz:
                raise ValueError('Num of labels does not match num of features')
        lab_full = jnp.tile(base_lab, n_views)              # view-major tiling
        lab_full = jnp.pad(lab_full, (0, R - N), constant_values=-1)
        lab_row = lab_full.reshape(R, 1)
        lab_col = lab_full[:n_pad].reshape(1, n_pad)
        mask_full = None
    else:
        # TODO(synk): the explicit mask is treated as binary (standard SupCon);
        # non-binary (weighted) masks would need a wider tile dtype here.
        anchor_count = n_views if contrast_mode == 'all' else 1
        tiled = jnp.tile((jnp.asarray(mask) != 0).astype(jnp.int8),
                         (anchor_count, n_views))            # [M, N] int8
        mask_full = jnp.zeros((m_pad, n_pad), jnp.int8).at[:M, :N].set(tiled)
        lab_row = lab_col = None

    cparams = pltpu.CompilerParams(
        dimension_semantics=("parallel", "arbitrary"),
        vmem_limit_bytes=vmem_limit)

    n_row_tiles = m_pad // tr
    n_col_tiles = n_pad // tc

    def _cost(extra_bytes=0):
        flops = 2 * m_pad * n_pad * d_pad + 12 * m_pad * n_pad
        transcendentals = 2 * m_pad * n_pad                  # sqrt + exp
        bytes_accessed = (m_pad * d_pad * x_bytes            # anchor rows, once
                          + n_row_tiles * n_pad * d_pad * x_bytes  # restreamed cols
                          + (m_pad + 2 * n_pad + m_pad) * 4  # norms/labels/out
                          + extra_bytes)
        return pl.CostEstimate(flops=int(flops),
                               transcendentals=int(transcendentals),
                               bytes_accessed=int(bytes_accessed))

    s_inv = None
    if is_code:
        # Pass 1: row sums of the distance matrix (used as a per-COLUMN scale,
        # matching the PyTorch broadcast).
        p1 = functools.partial(_dist_rowsum_kernel, n_valid=N, n_pad_cols=n_pad,
                               tr=tr, tc=tc)
        s = pl.pallas_call(
            p1,
            out_shape=jax.ShapeDtypeStruct((m_pad, 1), jnp.float32),
            grid=(n_row_tiles, n_col_tiles),
            in_specs=[
                pl.BlockSpec((tr, d_pad), lambda i, j: (i, 0)),
                pl.BlockSpec((tc, d_pad), lambda i, j: (j, 0)),
                pl.BlockSpec((tr, 1), lambda i, j: (i, 0)),
                pl.BlockSpec((1, tc), lambda i, j: (0, j)),
            ],
            out_specs=pl.BlockSpec((tr, 1), lambda i, j: (i, 0)),
            scratch_shapes=[pltpu.VMEM((tr, 128), jnp.float32)],
            compiler_params=cparams,
            cost_estimate=_cost(),
        )(x, x, sq_row, sq_col)
        s_vec = s.reshape(-1)[:N]
        s_inv = jnp.pad(1.0 / (s_vec + 1e-10), (0, n_pad - N),
                        constant_values=1.0).reshape(1, n_pad)

    in_specs = [
        pl.BlockSpec((tr, d_pad), lambda i, j: (i, 0)),   # anchor rows of x
        pl.BlockSpec((tc, d_pad), lambda i, j: (j, 0)),   # contrast cols of x
        pl.BlockSpec((tr, 1), lambda i, j: (i, 0)),       # ||x||^2, row orient.
        pl.BlockSpec((1, tc), lambda i, j: (0, j)),       # ||x||^2, col orient.
    ]
    inputs = [x, x, sq_row, sq_col]
    mask_bytes = 0
    if use_mask_input:
        in_specs.append(pl.BlockSpec((tr, tc), lambda i, j: (i, j)))
        inputs.append(mask_full)
        mask_bytes = m_pad * n_pad                      # int8
    else:
        in_specs += [pl.BlockSpec((tr, 1), lambda i, j: (i, 0)),
                     pl.BlockSpec((1, tc), lambda i, j: (0, j))]
        inputs += [lab_row, lab_col]
    if is_code:
        in_specs.append(pl.BlockSpec((1, tc), lambda i, j: (0, j)))
        inputs.append(s_inv)

    kernel = functools.partial(
        _supcon_main_kernel,
        neg_inv_temp=-1.0 / float(temperature),
        scale=float(temperature) / float(base_temperature),
        n_valid=N, n_pad_cols=n_pad, tr=tr, tc=tc,
        use_mask_input=use_mask_input, is_code=bool(is_code))

    per_anchor = pl.pallas_call(
        kernel,
        out_shape=jax.ShapeDtypeStruct((m_pad, 1), jnp.float32),
        grid=(n_row_tiles, n_col_tiles),
        in_specs=in_specs,
        out_specs=pl.BlockSpec((tr, 1), lambda i, j: (i, 0)),
        scratch_shapes=[pltpu.VMEM((tr, 128), jnp.float32)] * 3,
        compiler_params=cparams,
        cost_estimate=_cost(extra_bytes=mask_bytes),
    )(*inputs)

    # loss.view(anchor_count, batch_size).mean() == mean over the M anchors.
    return jnp.mean(per_anchor[:M, 0])


def _supcon_loss_ref(features, labels, *, temperature=0.07,
                     base_temperature=0.07, is_code=False):
    """Pure-JAX reference mirroring the PyTorch module (contrast_mode='all')."""
    bsz, n_views = features.shape[0], features.shape[1]
    feats = features.reshape(bsz, n_views, -1)
    cf = jnp.concatenate([feats[:, v, :] for v in range(n_views)], axis=0)
    base_mask = (labels.reshape(-1, 1) == labels.reshape(1, -1)).astype(jnp.float32)
    sq = jnp.sum(cf * cf, axis=-1, keepdims=True)
    d2 = jnp.maximum(sq + sq.T - 2.0 * cf @ cf.T, 0.0)
    dist = jnp.sqrt(d2)
    if is_code:
        dist = -dist / (jnp.sum(dist, axis=1)[None, :] + 1e-10)
    else:
        dist = -dist
    logits = dist / temperature
    logits = logits - jnp.max(logits, axis=1, keepdims=True)
    N = cf.shape[0]
    logits_mask = 1.0 - jnp.eye(N, dtype=jnp.float32)
    pos_mask = jnp.tile(base_mask, (n_views, n_views)) * logits_mask
    exp_logits = jnp.exp(logits) * logits_mask
    log_prob = logits - jnp.log(jnp.sum(exp_logits, axis=1, keepdims=True))
    mlpp = jnp.sum(pos_mask * log_prob, axis=1) / jnp.sum(pos_mask, axis=1)
    return jnp.mean(-(temperature / base_temperature) * mlpp)


if __name__ == "__main__":
    key = jax.random.PRNGKey(0)
    k_feat, k_lab = jax.random.split(key)

    bsz, n_views, dim = 8, 2, 32
    features = jax.random.normal(k_feat, (bsz, n_views, dim), dtype=jnp.float32)
    # L2-normalize features (standard for SupCon inputs).
    features = features / jnp.linalg.norm(features, axis=-1, keepdims=True)
    labels = jax.random.randint(k_lab, (bsz,), 0, 4)

    ref = _supcon_loss_ref(features, labels)

    # Strict-numerics f32 Gram path.
    loss_f32 = jax.block_until_ready(
        supcon_loss(features, labels=labels, use_bf16_gram=False))
    assert jnp.allclose(loss_f32, ref, rtol=1e-4, atol=1e-4), (loss_f32, ref)

    # Default bf16-Gram path (perf review): small numeric delta expected.
    loss_bf16 = jax.block_until_ready(supcon_loss(features, labels=labels))
    assert jnp.allclose(loss_bf16, ref, rtol=2e-2, atol=5e-2), (loss_bf16, ref)

    # SimCLR path (no labels / mask) == labels = arange(bsz).
    loss_simclr = jax.block_until_ready(
        supcon_loss(features, use_bf16_gram=False))
    ref_simclr = _supcon_loss_ref(features, jnp.arange(bsz))
    assert jnp.allclose(loss_simclr, ref_simclr, rtol=1e-4, atol=1e-4), (
        loss_simclr, ref_simclr)

    # Explicit-mask path (int8 mask tiles).
    mask = (labels[:, None] == labels[None, :]).astype(jnp.float32)
    loss_mask = jax.block_until_ready(
        supcon_loss(features, mask=mask, use_bf16_gram=False))
    assert jnp.allclose(loss_mask, ref, rtol=1e-4, atol=1e-4), (loss_mask, ref)

    # is_code path (two-pass: row-sum kernel + main kernel).
    loss_code = jax.block_until_ready(
        supcon_loss(features, labels=labels, is_code=True, use_bf16_gram=False))
    ref_code = _supcon_loss_ref(features, labels, is_code=True)
    assert jnp.allclose(loss_code, ref_code, rtol=1e-3, atol=1e-3), (
        loss_code, ref_code)

    print("KERNEL_OK")
</pallas_src>

<mosaic_0001>
module attributes {stable_mosaic.version = 11 : i64} {
  func.func @_supcon_main_kernel(%arg0: i32, %arg1: i32, %arg2: memref<32x128xf32, #tpu.memory_space<vmem>>, %arg3: memref<128x128xf32, #tpu.memory_space<vmem>>, %arg4: memref<32x1xf32, #tpu.memory_space<vmem>>, %arg5: memref<1x128xf32, #tpu.memory_space<vmem>>, %arg6: memref<32x1xi32, #tpu.memory_space<vmem>>, %arg7: memref<1x128xi32, #tpu.memory_space<vmem>>, %arg8: memref<32x1xf32, #tpu.memory_space<vmem>>, %arg9: memref<32x128xf32, #tpu.memory_space<vmem>>, %arg10: memref<32x128xf32, #tpu.memory_space<vmem>>, %arg11: memref<32x128xf32, #tpu.memory_space<vmem>>) attributes {dimension_semantics = [#tpu.dimension_semantics<parallel>, #tpu.dimension_semantics<arbitrary>], iteration_bounds = array<i64: 1, 1>, scalar_prefetch = 0 : i64, scratch_operands = 3 : i64, tpu.core_type = #tpu.core_type<tc>, window_params = [{transform_indices = @transform_0, window_bounds = array<i64: 32, 128>}, {transform_indices = @transform_1, window_bounds = array<i64: 128, 128>}, {transform_indices = @transform_2, window_bounds = array<i64: 32, 1>}, {transform_indices = @transform_3, window_bounds = array<i64: 1, 128>}, {transform_indices = @transform_4, window_bounds = array<i64: 32, 1>}, {transform_indices = @transform_5, window_bounds = array<i64: 1, 128>}, {transform_indices = @transform_6, window_bounds = array<i64: 32, 1>}]} {
    %c0_i32 = arith.constant 0 : i32
    %0 = arith.cmpi eq, %arg1, %c0_i32 : i32
    %1 = arith.extui %0 : i1 to i32
    %c0_i32_0 = arith.constant 0 : i32
    %2 = arith.cmpi ne, %1, %c0_i32_0 : i32
    scf.if %2 {
      %cst_18 = arith.constant 0.000000e+00 : f32
      %36 = vector.broadcast %cst_18 : f32 to vector<32x128xf32>
      %c0_19 = arith.constant 0 : index
      %c0_20 = arith.constant 0 : index
      %37 = vector.load %arg9[%c0_19, %c0_20] : memref<32x128xf32, #tpu.memory_space<vmem>>, vector<32x128xf32>
      tpu.vector_store %arg9[%c0_19, %c0_20], %36 {strides = array<i32>} : memref<32x128xf32, #tpu.memory_space<vmem>>, vector<32x128xf32>,
      %cst_21 = arith.constant 0.000000e+00 : f32
      %38 = vector.broadcast %cst_21 : f32 to vector<32x128xf32>
      %c0_22 = arith.constant 0 : index
      %c0_23 = arith.constant 0 : index
      %39 = vector.load %arg10[%c0_22, %c0_23] : memref<32x128xf32, #tpu.memory_space<vmem>>, vector<32x128xf32>
      tpu.vector_store %arg10[%c0_22, %c0_23], %38 {strides = array<i32>} : memref<32x128xf32, #tpu.memory_space<vmem>>, vector<32x128xf32>,
      %cst_24 = arith.constant 0.000000e+00 : f32
      %40 = vector.broadcast %cst_24 : f32 to vector<32x128xf32>
      %c0_25 = arith.constant 0 : index
      %c0_26 = arith.constant 0 : index
      %41 = vector.load %arg11[%c0_25, %c0_26] : memref<32x128xf32, #tpu.memory_space<vmem>>, vector<32x128xf32>
      tpu.vector_store %arg11[%c0_25, %c0_26], %40 {strides = array<i32>} : memref<32x128xf32, #tpu.memory_space<vmem>>, vector<32x128xf32>,
    } else {
    }
    %c0 = arith.constant 0 : index
    %c0_1 = arith.constant 0 : index
    %3 = vector.load %arg2[%c0, %c0_1] : memref<32x128xf32, #tpu.memory_space<vmem>>, vector<32x128xf32>
    %c0_2 = arith.constant 0 : index
    %c0_3 = arith.constant 0 : index
    %4 = vector.load %arg3[%c0_2, %c0_3] : memref<128x128xf32, #tpu.memory_space<vmem>>, vector<128x128xf32>
    %cst = arith.constant dense<0.000000e+00> : vector<32x128xf32>
    %5 = tpu.matmul %3, %4, %cst {dimension_numbers = #tpu.dot_dimension_numbers<[1], [1], [0], [0], [0, 0, 1, 0], [], []>} : vector<32x128xf32>, vector<128x128xf32>, vector<32x128xf32> -> vector<32x128xf32>
    %c0_4 = arith.constant 0 : index
    %c0_5 = arith.constant 0 : index
    %6 = vector.load %arg4[%c0_4, %c0_5] : memref<32x1xf32, #tpu.memory_space<vmem>>, vector<32x1xf32>
    %c0_6 = arith.constant 0 : index
    %c0_7 = arith.constant 0 : index
    %7 = vector.load %arg5[%c0_6, %c0_7] : memref<1x128xf32, #tpu.memory_space<vmem>>, vector<1x128xf32>
    %8 = vector.broadcast %6 : vector<32x1xf32> to vector<32x128xf32>
    %9 = vector.broadcast %7 : vector<1x128xf32> to vector<32x128xf32>
    %10 = arith.addf %8, %9 : vector<32x128xf32>
    %cst_8 = arith.constant 2.000000e+00 : f32
    %11 = vector.broadcast %cst_8 : f32 to vector<32x128xf32>
    %12 = arith.mulf %11, %5 : vector<32x128xf32>
    %13 = arith.subf %10, %12 : vector<32x128xf32>
    %cst_9 = arith.constant 0.000000e+00 : f32
    %14 = vector.broadcast %cst_9 : f32 to vector<32x128xf32>
    %15 = arith.maximumf %13, %14 : vector<32x128xf32>
    %16 = math.sqrt %15 : vector<32x128xf32>
    %cst_10 = arith.constant -14.2857141 : f32
    %17 = vector.broadcast %cst_10 : f32 to vector<32x128xf32>
    %18 = arith.mulf %16, %17 : vector<32x128xf32>
    %c32_i32 = arith.constant 32 : i32
    %19 = arith.muli %arg0, %c32_i32 : i32
    %c128_i32 = arith.constant 128 : i32
    %20 = arith.muli %arg1, %c128_i32 : i32
    %c32_i32_11 = arith.constant 32 : i32
    %21 = arith.addi %19, %c32_i32_11 : i32
    %22 = arith.cmpi slt, %20, %21 : i32
    %c128_i32_12 = arith.constant 128 : i32
    %23 = arith.addi %20, %c128_i32_12 : i32
    %24 = arith.cmpi slt, %19, %23 : i32
    %25 = arith.andi %22, %24 : i1
    %c0_i32_13 = arith.constant 0 : i32
    %26 = arith.cmpi eq, %arg1, %c0_i32_13 : i32
    %27 = arith.ori %25, %26 : i1
    %28 = arith.extui %27 : i1 to i32
    %c0_i32_14 = arith.constant 0 : i32
    %29 = arith.cmpi ne, %28, %c0_i32_14 : i32
    scf.if %29 {
      %36 = tpu.iota {dimensions = array<i32: 0>} : vector<32x1xi32>
      %37 = vector.broadcast %19 : i32 to vector<32x1xi32>
      %38 = arith.addi %37, %36 : vector<32x1xi32>
      %39 = tpu.iota {dimensions = array<i32: 1>} : vector<1x128xi32>
      %40 = vector.broadcast %20 : i32 to vector<1x128xi32>
      %41 = arith.addi %40, %39 : vector<1x128xi32>
      %c16_i32 = arith.constant 16 : i32
      %42 = vector.broadcast %c16_i32 : i32 to vector<1x128xi32>
      %43 = arith.cmpi slt, %41, %42 : vector<1x128xi32>
      %44 = vector.broadcast %38 : vector<32x1xi32> to vector<32x128xi32>
      %45 = vector.broadcast %41 : vector<1x128xi32> to vector<32x128xi32>
      %46 = arith.cmpi ne, %44, %45 : vector<32x128xi32>
      %47 = vector.broadcast %43 : vector<1x128xi1> to vector<32x128xi1>
      %48 = arith.andi %47, %46 : vector<32x128xi1>
      %cst_18 = arith.constant 1.000000e+00 : f32
      %cst_19 = arith.constant 0.000000e+00 : f32
      %49 = vector.broadcast %cst_18 : f32 to vector<32x128xf32>
      %50 = vector.broadcast %cst_19 : f32 to vector<32x128xf32>
      %51 = arith.select %48, %49, %50 : vector<32x128xi1>, vector<32x128xf32>
      %c0_20 = arith.constant 0 : index
      %c0_21 = arith.constant 0 : index
      %52 = vector.load %arg6[%c0_20, %c0_21] : memref<32x1xi32, #tpu.memory_space<vmem>>, vector<32x1xi32>
      %c0_22 = arith.constant 0 : index
      %c0_23 = arith.constant 0 : index
      %53 = vector.load %arg7[%c0_22, %c0_23] : memref<1x128xi32, #tpu.memory_space<vmem>>, vector<1x128xi32>
      %54 = vector.broadcast %52 : vector<32x1xi32> to vector<32x128xi32>
      %55 = vector.broadcast %53 : vector<1x128xi32> to vector<32x128xi32>
      %56 = arith.cmpi eq, %54, %55 : vector<32x128xi32>
      %cst_24 = arith.constant 1.000000e+00 : f32
      %cst_25 = arith.constant 0.000000e+00 : f32
      %57 = vector.broadcast %cst_24 : f32 to vector<32x128xf32>
      %58 = vector.broadcast %cst_25 : f32 to vector<32x128xf32>
      %59 = arith.select %56, %57, %58 : vector<32x128xi1>, vector<32x128xf32>
      %60 = arith.mulf %59, %51 : vector<32x128xf32>
      %61 = math.exp %18 : vector<32x128xf32>
      %62 = arith.mulf %61, %51 : vector<32x128xf32>
      %c0_26 = arith.constant 0 : index
      %c0_27 = arith.constant 0 : index
      %63 = vector.load %arg9[%c0_26, %c0_27] : memref<32x128xf32, #tpu.memory_space<vmem>>, vector<32x128xf32>
      %64 = arith.addf %63, %62 : vector<32x128xf32>
      %c0_28 = arith.constant 0 : index
      %c0_29 = arith.constant 0 : index
      %65 = vector.load %arg9[%c0_28, %c0_29] : memref<32x128xf32, #tpu.memory_space<vmem>>, vector<32x128xf32>
      tpu.vector_store %arg9[%c0_28, %c0_29], %64 {strides = array<i32>} : memref<32x128xf32, #tpu.memory_space<vmem>>, vector<32x128xf32>,
      %c0_30 = arith.constant 0 : index
      %c0_31 = arith.constant 0 : index
      %66 = vector.load %arg10[%c0_30, %c0_31] : memref<32x128xf32, #tpu.memory_space<vmem>>, vector<32x128xf32>
      %67 = arith.mulf %60, %18 : vector<32x128xf32>
      %68 = arith.addf %66, %67 : vector<32x128xf32>
      %c0_32 = arith.constant 0 : index
      %c0_33 = arith.constant 0 : index
      %69 = vector.load %arg10[%c0_32, %c0_33] : memref<32x128xf32, #tpu.memory_space<vmem>>, vector<32x128xf32>
      tpu.vector_store %arg10[%c0_32, %c0_33], %68 {strides = array<i32>} : memref<32x128xf32, #tpu.memory_space<vmem>>, vector<32x128xf32>,
      %c0_34 = arith.constant 0 : index
      %c0_35 = arith.constant 0 : index
      %70 = vector.load %arg11[%c0_34, %c0_35] : memref<32x128xf32, #tpu.memory_space<vmem>>, vector<32x128xf32>
      %71 = arith.addf %70, %60 : vector<32x128xf32>
      %c0_36 = arith.constant 0 : index
      %c0_37 = arith.constant 0 : index
      %72 = vector.load %arg11[%c0_36, %c0_37] : memref<32x128xf32, #tpu.memory_space<vmem>>, vector<32x128xf32>
      tpu.vector_store %arg11[%c0_36, %c0_37], %71 {strides = array<i32>} : memref<32x128xf32, #tpu.memory_space<vmem>>, vector<32x128xf32>,
    } else {
    }
    %true = arith.constant true
    %30 = arith.xori %27, %true : i1
    %31 = arith.extui %30 : i1 to i32
    %c0_i32_15 = arith.constant 0 : i32
    %32 = arith.cmpi ne, %31, %c0_i32_15 : i32
    scf.if %32 {
      %c0_18 = arith.constant 0 : index
      %c0_19 = arith.constant 0 : index
      %36 = vector.load %arg6[%c0_18, %c0_19] : memref<32x1xi32, #tpu.memory_space<vmem>>, vector<32x1xi32>
      %c0_20 = arith.constant 0 : index
      %c0_21 = arith.constant 0 : index
      %37 = vector.load %arg7[%c0_20, %c0_21] : memref<1x128xi32, #tpu.memory_space<vmem>>, vector<1x128xi32>
      %38 = vector.broadcast %36 : vector<32x1xi32> to vector<32x128xi32>
      %39 = vector.broadcast %37 : vector<1x128xi32> to vector<32x128xi32>
      %40 = arith.cmpi eq, %38, %39 : vector<32x128xi32>
      %cst_22 = arith.constant 1.000000e+00 : f32
      %cst_23 = arith.constant 0.000000e+00 : f32
      %41 = vector.broadcast %cst_22 : f32 to vector<32x128xf32>
      %42 = vector.broadcast %cst_23 : f32 to vector<32x128xf32>
      %43 = arith.select %40, %41, %42 : vector<32x128xi1>, vector<32x128xf32>
      %44 = math.exp %18 : vector<32x128xf32>
      %c0_24 = arith.constant 0 : index
      %c0_25 = arith.constant 0 : index
      %45 = vector.load %arg9[%c0_24, %c0_25] : memref<32x128xf32, #tpu.memory_space<vmem>>, vector<32x128xf32>
      %46 = arith.addf %45, %44 : vector<32x128xf32>
      %c0_26 = arith.constant 0 : index
      %c0_27 = arith.constant 0 : index
      %47 = vector.load %arg9[%c0_26, %c0_27] : memref<32x128xf32, #tpu.memory_space<vmem>>, vector<32x128xf32>
      tpu.vector_store %arg9[%c0_26, %c0_27], %46 {strides = array<i32>} : memref<32x128xf32, #tpu.memory_space<vmem>>, vector<32x128xf32>,
      %c0_28 = arith.constant 0 : index
      %c0_29 = arith.constant 0 : index
      %48 = vector.load %arg10[%c0_28, %c0_29] : memref<32x128xf32, #tpu.memory_space<vmem>>, vector<32x128xf32>
      %49 = arith.mulf %43, %18 : vector<32x128xf32>
      %50 = arith.addf %48, %49 : vector<32x128xf32>
      %c0_30 = arith.constant 0 : index
      %c0_31 = arith.constant 0 : index
      %51 = vector.load %arg10[%c0_30, %c0_31] : memref<32x128xf32, #tpu.memory_space<vmem>>, vector<32x128xf32>
      tpu.vector_store %arg10[%c0_30, %c0_31], %50 {strides = array<i32>} : memref<32x128xf32, #tpu.memory_space<vmem>>, vector<32x128xf32>,
      %c0_32 = arith.constant 0 : index
      %c0_33 = arith.constant 0 : index
      %52 = vector.load %arg11[%c0_32, %c0_33] : memref<32x128xf32, #tpu.memory_space<vmem>>, vector<32x128xf32>
      %53 = arith.addf %52, %43 : vector<32x128xf32>
      %c0_34 = arith.constant 0 : index
      %c0_35 = arith.constant 0 : index
      %54 = vector.load %arg11[%c0_34, %c0_35] : memref<32x128xf32, #tpu.memory_space<vmem>>, vector<32x128xf32>
      tpu.vector_store %arg11[%c0_34, %c0_35], %53 {strides = array<i32>} : memref<32x128xf32, #tpu.memory_space<vmem>>, vector<32x128xf32>,
    } else {
    }
    %c0_i32_16 = arith.constant 0 : i32
    %33 = arith.cmpi eq, %arg1, %c0_i32_16 : i32
    %34 = arith.extui %33 : i1 to i32
    %c0_i32_17 = arith.constant 0 : i32
    %35 = arith.cmpi ne, %34, %c0_i32_17 : i32
    scf.if %35 {
      %c0_18 = arith.constant 0 : index
      %c0_19 = arith.constant 0 : index
      %36 = vector.load %arg9[%c0_18, %c0_19] : memref<32x128xf32, #tpu.memory_space<vmem>>, vector<32x128xf32>
      %cst_20 = arith.constant dense<0.000000e+00> : vector<32xf32>
      %37 = vector.multi_reduction <add>, %36, %cst_20 [1] : vector<32x128xf32> to vector<32xf32>
      %38 = vector.shape_cast %37 : vector<32xf32> to vector<32x1xf32>
      %c0_21 = arith.constant 0 : index
      %c0_22 = arith.constant 0 : index
      %39 = vector.load %arg10[%c0_21, %c0_22] : memref<32x128xf32, #tpu.memory_space<vmem>>, vector<32x128xf32>
      %cst_23 = arith.constant dense<0.000000e+00> : vector<32xf32>
      %40 = vector.multi_reduction <add>, %39, %cst_23 [1] : vector<32x128xf32> to vector<32xf32>
      %41 = vector.shape_cast %40 : vector<32xf32> to vector<32x1xf32>
      %c0_24 = arith.constant 0 : index
      %c0_25 = arith.constant 0 : index
      %42 = vector.load %arg11[%c0_24, %c0_25] : memref<32x128xf32, #tpu.memory_space<vmem>>, vector<32x128xf32>
      %cst_26 = arith.constant dense<0.000000e+00> : vector<32xf32>
      %43 = vector.multi_reduction <add>, %42, %cst_26 [1] : vector<32x128xf32> to vector<32xf32>
      %44 = vector.shape_cast %43 : vector<32xf32> to vector<32x1xf32>
      %45 = math.log %38 : vector<32x1xf32>
      %46 = arith.mulf %44, %45 : vector<32x1xf32>
      %47 = arith.subf %41, %46 : vector<32x1xf32>
      %48 = arith.divf %47, %44 : vector<32x1xf32>
      %cst_27 = arith.constant -1.000000e+00 : f32
      %49 = vector.broadcast %cst_27 : f32 to vector<32x1xf32>
      %50 = arith.mulf %49, %48 : vector<32x1xf32>
      %c0_28 = arith.constant 0 : index
      %c0_29 = arith.constant 0 : index
      %51 = vector.load %arg8[%c0_28, %c0_29] : memref<32x1xf32, #tpu.memory_space<vmem>>, vector<32x1xf32>
      tpu.vector_store %arg8[%c0_28, %c0_29], %50 {strides = array<i32>} : memref<32x1xf32, #tpu.memory_space<vmem>>, vector<32x1xf32>,
    } else {
    }
    return
  }
  func.func @transform_0(%arg0: i32, %arg1: i32) -> (i32, i32) {
    %c0_i32 = arith.constant 0 : i32
    %c0_i32_0 = arith.constant 0 : i32
    return %arg0, %c0_i32 : i32, i32
  }
  func.func @transform_1(%arg0: i32, %arg1: i32) -> (i32, i32) {
    %c0_i32 = arith.constant 0 : i32
    %c0_i32_0 = arith.constant 0 : i32
    return %arg1, %c0_i32 : i32, i32
  }
  func.func @transform_2(%arg0: i32, %arg1: i32) -> (i32, i32) {
    %c0_i32 = arith.constant 0 : i32
    %c0_i32_0 = arith.constant 0 : i32
    return %arg0, %c0_i32 : i32, i32
  }
  func.func @transform_3(%arg0: i32, %arg1: i32) -> (i32, i32) {
    %c0_i32 = arith.constant 0 : i32
    %c0_i32_0 = arith.constant 0 : i32
    return %c0_i32, %arg1 : i32, i32
  }
  func.func @transform_4(%arg0: i32, %arg1: i32) -> (i32, i32) {
    %c0_i32 = arith.constant 0 : i32
    %c0_i32_0 = arith.constant 0 : i32
    return %arg0, %c0_i32 : i32, i32
  }
  func.func @transform_5(%arg0: i32, %arg1: i32) -> (i32, i32) {
    %c0_i32 = arith.constant 0 : i32
    %c0_i32_0 = arith.constant 0 : i32
    return %c0_i32, %arg1 : i32, i32
  }
  func.func @transform_6(%arg0: i32, %arg1: i32) -> (i32, i32) {
    %c0_i32 = arith.constant 0 : i32
    %c0_i32_0 = arith.constant 0 : i32
    return %arg0, %c0_i32 : i32, i32
  }
}

</mosaic_0001>

<llo_original>
// kernel: tpu_custom_call.1
$region0: #{tpu_custom_call.1}
  #allocation0 [shape = 'u32[]', space=smem, size = 0x4, offset = 0x4, fixed_abs, tag = 'smem constant byte address 0x4 - core index']
  #allocation1 [shape = 'u32[144,128]{1,0:T(1,128)}', space=vmem, size = 0x12000, scoped, tag = 'internal scratch']
  #allocation2 [shape = 'f32[32,128]{1,0:T(8,128)}', space=vmem, size = 0x4000, scoped, tag = 'scratch operand']
  #allocation3 [shape = 'f32[32,128]{1,0:T(8,128)}', space=vmem, size = 0x4000, scoped, tag = 'scratch operand']
  #allocation4 [shape = 'f32[32,128]{1,0:T(8,128)}', space=vmem, size = 0x4000, scoped, tag = 'scratch operand']
  %s0 = inlined_call_operand.vmem [shape: f32[128,128], index: 0, kind: input, shape index: {}]
  %s1 = inlined_call_operand.vmem [shape: f32[128,128], index: 1, kind: input, shape index: {}]
  %s2 = inlined_call_operand.vmem [shape: f32[128,1], index: 2, kind: input, shape index: {}]
  %s3 = inlined_call_operand.vmem [shape: f32[1,128], index: 3, kind: input, shape index: {}]
  %s4 = inlined_call_operand.vmem [shape: s32[128,1], index: 4, kind: input, shape index: {}]
  %s5 = inlined_call_operand.vmem [shape: s32[1,128], index: 5, kind: input, shape index: {}]
  %s6 = inlined_call_operand.vmem [shape: f32[32,1], index: 6, kind: output, shape index: {}]
  %s7 = sld [smem:[#allocation0]]
  $region50: #{tpu_custom_call.1} parent=0
    _
  %s9 = ssub.s32 1, %s7
  %s10 = scalar_select 0, %s9, %s7
  // Predicated region
  $region2: #{tpu_custom_call.1} parent=0 // pred_check
    _
  $region3: #{tpu_custom_call.1} parent=0 // pred_check_branch
    %12 = sbr.rel (0) target = $region5
  $region4: #{tpu_custom_call.1} parent=0 // pred_region
    _
  $region5: #{tpu_custom_call.1} parent=0 // pred_fallthru
    _
  // Predicated region
  $region6: #{tpu_custom_call.1} parent=0 // pred_check
    _
  $region7: #{tpu_custom_call.1} parent=0 // pred_check_branch
    %14 = sbr.rel (0) target = $region9
  $region8: #{tpu_custom_call.1} parent=0 // pred_region
    _
  $region9: #{tpu_custom_call.1} parent=0 // pred_fallthru
    _
  // Predicated region
  $region10: #{tpu_custom_call.1} parent=0 // pred_check
    _
  $region11: #{tpu_custom_call.1} parent=0 // pred_check_branch
    %16 = sbr.rel (0) target = $region13
  $region12: #{tpu_custom_call.1} parent=0 // pred_region
    _
  $region13: #{tpu_custom_call.1} parent=0 // pred_fallthru
    _
  // Predicated region
  $region14: #{tpu_custom_call.1} parent=0 // pred_check
    _
  $region15: #{tpu_custom_call.1} parent=0 // pred_check_branch
    %18 = sbr.rel (0) target = $region17
  $region16: #{tpu_custom_call.1} parent=0 // pred_region
    _
  $region17: #{tpu_custom_call.1} parent=0 // pred_fallthru
    _
  // Predicated region
  $region18: #{tpu_custom_call.1} parent=0 // pred_check
    _
  $region19: #{tpu_custom_call.1} parent=0 // pred_check_branch
    %20 = sbr.rel (0) target = $region21
  $region20: #{tpu_custom_call.1} parent=0 // pred_region
    _
  $region21: #{tpu_custom_call.1} parent=0 // pred_fallthru
    _
  // Predicated region
  $region22: #{tpu_custom_call.1} parent=0 // pred_check
    _
  $region23: #{tpu_custom_call.1} parent=0 // pred_check_branch
    %22 = sbr.rel (0) target = $region25
  $region24: #{tpu_custom_call.1} parent=0 // pred_region
    _
  $region25: #{tpu_custom_call.1} parent=0 // pred_fallthru
    _
  %p23 = scmp.eq.s32.totalorder 0, 0
  // Predicated region
  $region26: #{tpu_custom_call.1} parent=0 // pred_check
    %p24 = pneg %p23
  $region27: #{tpu_custom_call.1} parent=0 // pred_check_branch
    %26 = sbr.rel (%p24) target = $region29
  $region28: #{tpu_custom_call.1} parent=0 // pred_region
    %27 = vst [vmem:[#allocation2] sm:$0xff] 0.0
    %28 = vst [vmem:[#allocation2 + $0x8] sm:$0xff] 0.0
    %29 = vst [vmem:[#allocation2 + $0x10] sm:$0xff] 0.0
    %30 = vst [vmem:[#allocation2 + $0x18] sm:$0xff] 0.0
    %31 = vst [vmem:[#allocation3] sm:$0xff] 0.0
    %32 = vst [vmem:[#allocation3 + $0x8] sm:$0xff] 0.0
    %33 = vst [vmem:[#allocation3 + $0x10] sm:$0xff] 0.0
    %34 = vst [vmem:[#allocation3 + $0x18] sm:$0xff] 0.0
    %35 = vst [vmem:[#allocation4] sm:$0xff] 0.0
    %36 = vst [vmem:[#allocation4 + $0x8] sm:$0xff] 0.0
    %37 = vst [vmem:[#allocation4 + $0x10] sm:$0xff] 0.0
    %38 = vst [vmem:[#allocation4 + $0x18] sm:$0xff] 0.0
  $region29: #{tpu_custom_call.1} parent=0 // pred_fallthru
    _
  %v39 = vld [vmem:[%s0] sm:$0xff]
  %v40 = vld [vmem:[%s0 + $0x8] sm:$0xff]
  %v41 = vld [vmem:[%s0 + $0x10] sm:$0xff]
  %v42 = vld [vmem:[%s0 + $0x18] sm:$0xff]
  %v43 = vld [vmem:[%s1] sm:$0xff]
  %v44 = vld [vmem:[%s1 + $0x8] sm:$0xff]
  %v45 = vld [vmem:[%s1 + $0x10] sm:$0xff]
  %v46 = vld [vmem:[%s1 + $0x18] sm:$0xff]
  %v47 = vld [vmem:[%s1 + $0x20] sm:$0xff]
  %v48 = vld [vmem:[%s1 + $0x28] sm:$0xff]
  %v49 = vld [vmem:[%s1 + $0x30] sm:$0xff]
  %v50 = vld [vmem:[%s1 + $0x38] sm:$0xff]
  %v51 = vld [vmem:[%s1 + $0x40] sm:$0xff]
  %v52 = vld [vmem:[%s1 + $0x48] sm:$0xff]
  %v53 = vld [vmem:[%s1 + $0x50] sm:$0xff]
  %v54 = vld [vmem:[%s1 + $0x58] sm:$0xff]
  %v55 = vld [vmem:[%s1 + $0x60] sm:$0xff]
  %v56 = vld [vmem:[%s1 + $0x68] sm:$0xff]
  %v57 = vld [vmem:[%s1 + $0x70] sm:$0xff]
  %v58 = vld [vmem:[%s1 + $0x78] sm:$0xff]
  %59 = vmatprep.subr.mxu0 0.0
  %60 = vmatpush1.xpose.msra.mxu0 %v43
  %61 = vmatprep.subr.mxu0 0.0
  %62 = vmatpush1.xpose.msra.mxu0 %v44
  %63 = vmatprep.subr.mxu0 0.0
  %64 = vmatpush1.xpose.msra.mxu0 %v45
  %65 = vmatprep.subr.mxu0 0.0
  %66 = vmatpush1.xpose.msra.mxu0 %v46
  %67 = vmatprep.subr.mxu0 0.0
  %68 = vmatpush1.xpose.msra.mxu0 %v47
  %69 = vmatprep.subr.mxu0 0.0
  %70 = vmatpush1.xpose.msra.mxu0 %v48
  %71 = vmatprep.subr.mxu0 0.0
  %72 = vmatpush1.xpose.msra.mxu0 %v49
  %73 = vmatprep.subr.mxu0 0.0
  %74 = vmatpush1.xpose.msra.mxu0 %v50
  %75 = vmatprep.subr.mxu0 0.0
  %76 = vmatpush1.xpose.msra.mxu0 %v51
  %77 = vmatprep.subr.mxu0 0.0
  %78 = vmatpush1.xpose.msra.mxu0 %v52
  %79 = vmatprep.subr.mxu0 0.0
  %80 = vmatpush1.xpose.msra.mxu0 %v53
  %81 = vmatprep.subr.mxu0 0.0
  %82 = vmatpush1.xpose.msra.mxu0 %v54
  %83 = vmatprep.subr.mxu0 0.0
  %84 = vmatpush1.xpose.msra.mxu0 %v55
  %85 = vmatprep.subr.mxu0 0.0
  %86 = vmatpush1.xpose.msra.mxu0 %v56
  %87 = vmatprep.subr.mxu0 0.0
  %88 = vmatpush1.xpose.msra.mxu0 %v57
  %89 = vmatprep.subr.mxu0 0.0
  %90 = vmatpush1.xpose.msra.mxu0 %v58
  %91 = vmatprep.subr.mxu0 0.0
  %92 = vmatpush1.xpose.msra.mxu0 0.0
  %93 = vmatprep.subr.mxu0 0.0
  %94 = vmatpush1.xpose.msra.mxu0 0.0
  %95 = vmatprep.subr.mxu0 0.0
  %96 = vmatpush1.xpose.msra.mxu0 0.0
  %97 = vmatprep.subr.mxu0 0.0
  %98 = vmatpush1.xpose.msra.mxu0 0.0
  %99 = vmatprep.subr.mxu0 0.0
  %100 = vmatpush1.xpose.msra.mxu0 0.0
  %101 = vmatprep.subr.mxu0 0.0
  %102 = vmatpush1.xpose.msra.mxu0 0.0
  %103 = vmatprep.subr.mxu0 0.0
  %104 = vmatpush1.xpose.msra.mxu0 0.0
  %105 = vmatprep.subr.mxu0 0.0
  %106 = vmatpush1.xpose.msra.mxu0 0.0
  %107 = vmatprep.subr.mxu0 0.0
  %108 = vmatpush1.xpose.msra.mxu0 0.0
  %109 = vmatprep.subr.mxu0 0.0
  %110 = vmatpush1.xpose.msra.mxu0 0.0
  %111 = vmatprep.subr.mxu0 0.0
  %112 = vmatpush1.xpose.msra.mxu0 0.0
  %113 = vmatprep.subr.mxu0 0.0
  %114 = vmatpush1.xpose.msra.mxu0 0.0
  %115 = vmatprep.subr.mxu0 0.0
  %116 = vmatpush1.xpose.msra.mxu0 0.0
  %117 = vmatprep.subr.mxu0 0.0
  %118 = vmatpush1.xpose.msra.mxu0 0.0
  %119 = vmatprep.subr.mxu0 0.0
  %120 = vmatpush1.xpose.msra.mxu0 0.0
  %121 = vmatprep.subr.mxu0 0.0
  %122 = vmatpush1.xpose.msra.mxu0 0.0
  %123 = vmatprep.mubr.f32.mxu0 0.0
  %124 = vmatmul.mubr.f32.gmra.mrb[0].mxu0 %v39
  %v125 = vpop.f32.mrb[0].mxu0
  %v126 = vadd.f32 0.0, %v125
  %v127 = vpop.f32.mrb[0].mxu0
  %128 = vmatprep.mubr.f32.mxu0 0.0
  %129 = vmatmul.mubr.f32.gmra.mrb[0].mxu0 %v40
  %v130 = vpop.f32.mrb[0].mxu0
  %v131 = vadd.f32 0.0, %v130
  %v132 = vpop.f32.mrb[0].mxu0
  %133 = vmatprep.mubr.f32.mxu0 0.0
  %134 = vmatmul.mubr.f32.gmra.mrb[0].mxu0 %v41
  %v135 = vpop.f32.mrb[0].mxu0
  %v136 = vadd.f32 0.0, %v135
  %v137 = vpop.f32.mrb[0].mxu0
  %138 = vmatprep.mubr.f32.mxu0 0.0
  %139 = vmatmul.mubr.f32.gmra.mrb[0].mxu0 %v42
  %v140 = vpop.f32.mrb[0].mxu0
  %v141 = vadd.f32 0.0, %v140
  %v142 = vpop.f32.mrb[0].mxu0
  %143 = vdwg.mxu0
  %v144 = vld [vmem:[%s2] sm:$0xff]
  %v145 = vld [vmem:[%s2 + $0x8] sm:$0xff]
  %v146 = vld [vmem:[%s2 + $0x10] sm:$0xff]
  %v147 = vld [vmem:[%s2 + $0x18] sm:$0xff]
  %v148 = vld [vmem:[%s3] sm:$0x1]
  %150 = vset.pattern.permute.xlu0 0
  %151 = vperm.xlu0 %150, %v144
  %v152 = vpop.permute.xlu0 %151
  %155 = vset.pattern.permute.xlu0 0
  %156 = vperm.xlu0 %155, %v145
  %v157 = vpop.permute.xlu0 %156
  %160 = vset.pattern.permute.xlu0 0
  %161 = vperm.xlu0 %160, %v146
  %v162 = vpop.permute.xlu0 %161
  %165 = vset.pattern.permute.xlu0 0
  %166 = vperm.xlu0 %165, %v147
  %v167 = vpop.permute.xlu0 %166
  %v170 = vlaneseq
  %v171 = vshrl.u32 %v170, 7
  %v172 = vsub.s32 0, %v171
  %v173 = vrot.slane %v148, %v172
  %v175 = vadd.f32 %v152, %v173
  %v176 = vadd.f32 %v157, %v173
  %v177 = vadd.f32 %v162, %v173
  %v178 = vadd.f32 %v167, %v173
  %v179 = vmul.f32 %v126, 2.0
  %v180 = vmul.f32 %v131, 2.0
  %v181 = vmul.f32 %v136, 2.0
  %v182 = vmul.f32 %v141, 2.0
  %v183 = vsub.f32 %v175, %v179
  %v184 = vsub.f32 %v176, %v180
  %v185 = vsub.f32 %v177, %v181
  %v186 = vsub.f32 %v178, %v182
  %v187 = vmax.f32 %v183, 0.0
  %v188 = vmax.f32 %v184, 0.0
  %v189 = vmax.f32 %v185, 0.0
  %v190 = vmax.f32 %v186, 0.0
  %v191 = vrsqrt.pop %v187
  %v192 = vmul.f32 %v187, %v191
  %vm193 = vcmp.eq.f32.partialorder %v187, inf
  %v194 = vsel %vm193, %v187, %v192
  %vm195 = vcmp.eq.f32.partialorder %v187, 0.0
  %v196 = vand.u32 %v187, 2147483648
  %v197 = vsel %vm195, %v196, %v194
  %v198 = vrsqrt.pop %v188
  %v199 = vmul.f32 %v188, %v198
  %vm200 = vcmp.eq.f32.partialorder %v188, inf
  %v201 = vsel %vm200, %v188, %v199
  %vm202 = vcmp.eq.f32.partialorder %v188, 0.0
  %v203 = vand.u32 %v188, 2147483648
  %v204 = vsel %vm202, %v203, %v201
  %v205 = vrsqrt.pop %v189
  %v206 = vmul.f32 %v189, %v205
  %vm207 = vcmp.eq.f32.partialorder %v189, inf
  %v208 = vsel %vm207, %v189, %v206
  %vm209 = vcmp.eq.f32.partialorder %v189, 0.0
  %v210 = vand.u32 %v189, 2147483648
  %v211 = vsel %vm209, %v210, %v208
  %v212 = vrsqrt.pop %v190
  %v213 = vmul.f32 %v190, %v212
  %vm214 = vcmp.eq.f32.partialorder %v190, inf
  %v215 = vsel %vm214, %v190, %v213
  %vm216 = vcmp.eq.f32.partialorder %v190, 0.0
  %v217 = vand.u32 %v190, 2147483648
  %v218 = vsel %vm216, %v217, %v215
  %v219 = vmul.f32 %v197, -14.285714
  %v220 = vmul.f32 %v204, -14.285714
  %v221 = vmul.f32 %v211, -14.285714
  %v222 = vmul.f32 %v218, -14.285714
  %s223 = smul.u32 0, 32
  %s224 = smul.u32 0, 128
  %s225 = sadd.s32 %s223, 32
  %p226 = scmp.lt.s32.totalorder %s224, %s225
  %s227 = sadd.s32 %s224, 128
  %p228 = scmp.lt.s32.totalorder %s223, %s227
  %p229 = pnand %p226, %p228
  %p230 = pneg %p229
  %p231 = por %p230, %p23
  // Predicated region
  $region30: #{tpu_custom_call.1} parent=0 // pred_check
    %p232 = pneg %p231
  $region31: #{tpu_custom_call.1} parent=0 // pred_check_branch
    %234 = sbr.rel (%p232) target = $region33
  $region32: #{tpu_custom_call.1} parent=0 // pred_region
    %v235 = vlaneseq
    %v236 = vshrl.u32 %v235, 7
    %v237 = vadd.s32 %v236, 8
    %v238 = vadd.s32 %v236, 16
    %v239 = vadd.s32 %v236, 24
    %v240 = vstv %s223
    %v241 = vadd.s32 %v240, %v236
    %v242 = vadd.s32 %v240, %v237
    %v243 = vadd.s32 %v240, %v238
    %v244 = vadd.s32 %v240, %v239
    %v245 = vlaneseq
    %v246 = vand.u32 %v245, 127
    %v247 = vstv %s224
    %v248 = vadd.s32 %v247, %v246
    %vm249 = vcmp.lt.s32.totalorder %v248, 16
    %vm250 = vcmp.ne.s32.totalorder %v241, %v248
    %vm251 = vcmp.ne.s32.totalorder %v242, %v248
    %vm252 = vcmp.ne.s32.totalorder %v243, %v248
    %vm253 = vcmp.ne.s32.totalorder %v244, %v248
    %v254 = vsel %vm249, 1, 0
    %vm255 = vcmp.eq.s32.totalorder %v254, 1
    %vm256 = vmand %vm255, %vm250
    %vm257 = vmand %vm255, %vm251
    %vm258 = vmand %vm255, %vm252
    %vm259 = vmand %vm255, %vm253
    %v260 = vsel %vm256, 1.0, 0.0
    %v261 = vsel %vm257, 1.0, 0.0
    %v262 = vsel %vm258, 1.0, 0.0
    %v263 = vsel %vm259, 1.0, 0.0
    %v264 = vld [vmem:[%s4] sm:$0xff]
    %v265 = vld [vmem:[%s4 + $0x8] sm:$0xff]
    %v266 = vld [vmem:[%s4 + $0x10] sm:$0xff]
    %v267 = vld [vmem:[%s4 + $0x18] sm:$0xff]
    %v268 = vld [vmem:[%s5] sm:$0x1]
    %269 = vset.pattern.permute.xlu0 0
    %270 = vperm.xlu0 %269, %v264
    %v271 = vpop.permute.xlu0 %270
    %272 = vset.pattern.permute.xlu0 0
    %273 = vperm.xlu0 %272, %v265
    %v274 = vpop.permute.xlu0 %273
    %275 = vset.pattern.permute.xlu0 0
    %276 = vperm.xlu0 %275, %v266
    %v277 = vpop.permute.xlu0 %276
    %278 = vset.pattern.permute.xlu0 0
    %279 = vperm.xlu0 %278, %v267
    %v280 = vpop.permute.xlu0 %279
    %v281 = vlaneseq
    %v282 = vshrl.u32 %v281, 7
    %v283 = vsub.s32 0, %v282
    %v284 = vrot.slane %v268, %v283
    %vm285 = vcmp.eq.s32.totalorder %v271, %v284
    %vm286 = vcmp.eq.s32.totalorder %v274, %v284
    %vm287 = vcmp.eq.s32.totalorder %v277, %v284
    %vm288 = vcmp.eq.s32.totalorder %v280, %v284
    %v289 = vsel %vm285, 1.0, 0.0
    %v290 = vsel %vm286, 1.0, 0.0
    %v291 = vsel %vm287, 1.0, 0.0
    %v292 = vsel %vm288, 1.0, 0.0
    %v293 = vmul.f32 %v289, %v260
    %v294 = vmul.f32 %v290, %v261
    %v295 = vmul.f32 %v291, %v262
    %v296 = vmul.f32 %v292, %v263
    %v297 = vmul.f32 %v219, 1.442695
    %v298 = vpow.pop %v297
    %v299 = vmul.f32 %v220, 1.442695
    %v300 = vpow.pop %v299
    %v301 = vmul.f32 %v221, 1.442695
    %v302 = vpow.pop %v301
    %v303 = vmul.f32 %v222, 1.442695
    %v304 = vpow.pop %v303
    %v305 = vmul.f32 %v298, %v260
    %v306 = vmul.f32 %v300, %v261
    %v307 = vmul.f32 %v302, %v262
    %v308 = vmul.f32 %v304, %v263
    %v309 = vld [vmem:[#allocation2] sm:$0xff]
    %v310 = vld [vmem:[#allocation2 + $0x8] sm:$0xff]
    %v311 = vld [vmem:[#allocation2 + $0x10] sm:$0xff]
    %v312 = vld [vmem:[#allocation2 + $0x18] sm:$0xff]
    %v313 = vadd.f32 %v309, %v305
    %v314 = vadd.f32 %v310, %v306
    %v315 = vadd.f32 %v311, %v307
    %v316 = vadd.f32 %v312, %v308
    %317 = vst [vmem:[#allocation2] sm:$0xff] %v313
    %318 = vst [vmem:[#allocation2 + $0x8] sm:$0xff] %v314
    %319 = vst [vmem:[#allocation2 + $0x10] sm:$0xff] %v315
    %320 = vst [vmem:[#allocation2 + $0x18] sm:$0xff] %v316
    %v321 = vld [vmem:[#allocation3] sm:$0xff]
    %v322 = vld [vmem:[#allocation3 + $0x8] sm:$0xff]
    %v323 = vld [vmem:[#allocation3 + $0x10] sm:$0xff]
    %v324 = vld [vmem:[#allocation3 + $0x18] sm:$0xff]
    %v325 = vmul.f32 %v293, %v219
    %v326 = vmul.f32 %v294, %v220
    %v327 = vmul.f32 %v295, %v221
    %v328 = vmul.f32 %v296, %v222
    %v329 = vadd.f32 %v321, %v325
    %v330 = vadd.f32 %v322, %v326
    %v331 = vadd.f32 %v323, %v327
    %v332 = vadd.f32 %v324, %v328
    %333 = vst [vmem:[#allocation3] sm:$0xff] %v329
    %334 = vst [vmem:[#allocation3 + $0x8] sm:$0xff] %v330
    %335 = vst [vmem:[#allocation3 + $0x10] sm:$0xff] %v331
    %336 = vst [vmem:[#allocation3 + $0x18] sm:$0xff] %v332
    %v337 = vld [vmem:[#allocation4] sm:$0xff]
    %v338 = vld [vmem:[#allocation4 + $0x8] sm:$0xff]
    %v339 = vld [vmem:[#allocation4 + $0x10] sm:$0xff]
    %v340 = vld [vmem:[#allocation4 + $0x18] sm:$0xff]
    %v341 = vadd.f32 %v337, %v293
    %v342 = vadd.f32 %v338, %v294
    %v343 = vadd.f32 %v339, %v295
    %v344 = vadd.f32 %v340, %v296
    %345 = vst [vmem:[#allocation4] sm:$0xff] %v341
    %346 = vst [vmem:[#allocation4 + $0x8] sm:$0xff] %v342
    %347 = vst [vmem:[#allocation4 + $0x10] sm:$0xff] %v343
    %348 = vst [vmem:[#allocation4 + $0x18] sm:$0xff] %v344
  $region33: #{tpu_custom_call.1} parent=0 // pred_fallthru
    _
  %p349 = pneg %p231
  // Predicated region
  $region34: #{tpu_custom_call.1} parent=0 // pred_check
    _
  $region35: #{tpu_custom_call.1} parent=0 // pred_check_branch
    %351 = sbr.rel (%p231) target = $region37
  $region36: #{tpu_custom_call.1} parent=0 // pred_region
    %v352 = vld [vmem:[%s4] sm:$0xff]
    %v353 = vld [vmem:[%s4 + $0x8] sm:$0xff]
    %v354 = vld [vmem:[%s4 + $0x10] sm:$0xff]
    %v355 = vld [vmem:[%s4 + $0x18] sm:$0xff]
    %v356 = vld [vmem:[%s5] sm:$0x1]
    %357 = vset.pattern.permute.xlu0 0
    %358 = vperm.xlu0 %357, %v352
    %v359 = vpop.permute.xlu0 %358
    %360 = vset.pattern.permute.xlu0 0
    %361 = vperm.xlu0 %360, %v353
    %v362 = vpop.permute.xlu0 %361
    %363 = vset.pattern.permute.xlu0 0
    %364 = vperm.xlu0 %363, %v354
    %v365 = vpop.permute.xlu0 %364
    %366 = vset.pattern.permute.xlu0 0
    %367 = vperm.xlu0 %366, %v355
    %v368 = vpop.permute.xlu0 %367
    %v369 = vlaneseq
    %v370 = vshrl.u32 %v369, 7
    %v371 = vsub.s32 0, %v370
    %v372 = vrot.slane %v356, %v371
    %vm373 = vcmp.eq.s32.totalorder %v359, %v372
    %vm374 = vcmp.eq.s32.totalorder %v362, %v372
    %vm375 = vcmp.eq.s32.totalorder %v365, %v372
    %vm376 = vcmp.eq.s32.totalorder %v368, %v372
    %v377 = vsel %vm373, 1.0, 0.0
    %v378 = vsel %vm374, 1.0, 0.0
    %v379 = vsel %vm375, 1.0, 0.0
    %v380 = vsel %vm376, 1.0, 0.0
    %v381 = vmul.f32 %v219, 1.442695
    %v382 = vpow.pop %v381
    %v383 = vmul.f32 %v220, 1.442695
    %v384 = vpow.pop %v383
    %v385 = vmul.f32 %v221, 1.442695
    %v386 = vpow.pop %v385
    %v387 = vmul.f32 %v222, 1.442695
    %v388 = vpow.pop %v387
    %v389 = vld [vmem:[#allocation2] sm:$0xff]
    %v390 = vld [vmem:[#allocation2 + $0x8] sm:$0xff]
    %v391 = vld [vmem:[#allocation2 + $0x10] sm:$0xff]
    %v392 = vld [vmem:[#allocation2 + $0x18] sm:$0xff]
    %v393 = vadd.f32 %v389, %v382
    %v394 = vadd.f32 %v390, %v384
    %v395 = vadd.f32 %v391, %v386
    %v396 = vadd.f32 %v392, %v388
    %397 = vst [vmem:[#allocation2] sm:$0xff] %v393
    %398 = vst [vmem:[#allocation2 + $0x8] sm:$0xff] %v394
    %399 = vst [vmem:[#allocation2 + $0x10] sm:$0xff] %v395
    %400 = vst [vmem:[#allocation2 + $0x18] sm:$0xff] %v396
    %v401 = vld [vmem:[#allocation3] sm:$0xff]
    %v402 = vld [vmem:[#allocation3 + $0x8] sm:$0xff]
    %v403 = vld [vmem:[#allocation3 + $0x10] sm:$0xff]
    %v404 = vld [vmem:[#allocation3 + $0x18] sm:$0xff]
    %v405 = vmul.f32 %v377, %v219
    %v406 = vmul.f32 %v378, %v220
    %v407 = vmul.f32 %v379, %v221
    %v408 = vmul.f32 %v380, %v222
    %v409 = vadd.f32 %v401, %v405
    %v410 = vadd.f32 %v402, %v406
    %v411 = vadd.f32 %v403, %v407
    %v412 = vadd.f32 %v404, %v408
    %413 = vst [vmem:[#allocation3] sm:$0xff] %v409
    %414 = vst [vmem:[#allocation3 + $0x8] sm:$0xff] %v410
    %415 = vst [vmem:[#allocation3 + $0x10] sm:$0xff] %v411
    %416 = vst [vmem:[#allocation3 + $0x18] sm:$0xff] %v412
    %v417 = vld [vmem:[#allocation4] sm:$0xff]
    %v418 = vld [vmem:[#allocation4 + $0x8] sm:$0xff]
    %v419 = vld [vmem:[#allocation4 + $0x10] sm:$0xff]
    %v420 = vld [vmem:[#allocation4 + $0x18] sm:$0xff]
    %v421 = vadd.f32 %v417, %v377
    %v422 = vadd.f32 %v418, %v378
    %v423 = vadd.f32 %v419, %v379
    %v424 = vadd.f32 %v420, %v380
    %425 = vst [vmem:[#allocation4] sm:$0xff] %v421
    %426 = vst [vmem:[#allocation4 + $0x8] sm:$0xff] %v422
    %427 = vst [vmem:[#allocation4 + $0x10] sm:$0xff] %v423
    %428 = vst [vmem:[#allocation4 + $0x18] sm:$0xff] %v424
  $region37: #{tpu_custom_call.1} parent=0 // pred_fallthru
    _
  // Predicated region
  $region38: #{tpu_custom_call.1} parent=0 // pred_check
    %p429 = pneg %p23
  $region39: #{tpu_custom_call.1} parent=0 // pred_check_branch
    %431 = sbr.rel (%p429) target = $region41
  $region40: #{tpu_custom_call.1} parent=0 // pred_region
    %v432 = vld [vmem:[#allocation2] sm:$0xff]
    %v433 = vld [vmem:[#allocation2 + $0x8] sm:$0xff]
    %v434 = vld [vmem:[#allocation2 + $0x10] sm:$0xff]
    %v435 = vld [vmem:[#allocation2 + $0x18] sm:$0xff]
    %436 = vadd.xlane.f32.xlu0 %v432
    %v437 = vpop.xlane.xlu0 %436
    %438 = vadd.xlane.f32.xlu0 %v433
    %v439 = vpop.xlane.xlu0 %438
    %440 = vadd.xlane.f32.xlu0 %v434
    %v441 = vpop.xlane.xlu0 %440
    %442 = vadd.xlane.f32.xlu0 %v435
    %v443 = vpop.xlane.xlu0 %442
    %v444 = vld [vmem:[#allocation3] sm:$0xff]
    %v445 = vld [vmem:[#allocation3 + $0x8] sm:$0xff]
    %v446 = vld [vmem:[#allocation3 + $0x10] sm:$0xff]
    %v447 = vld [vmem:[#allocation3 + $0x18] sm:$0xff]
    %448 = vadd.xlane.f32.xlu0 %v444
    %v449 = vpop.xlane.xlu0 %448
    %450 = vadd.xlane.f32.xlu0 %v445
    %v451 = vpop.xlane.xlu0 %450
    %452 = vadd.xlane.f32.xlu0 %v446
    %v453 = vpop.xlane.xlu0 %452
    %454 = vadd.xlane.f32.xlu0 %v447
    %v455 = vpop.xlane.xlu0 %454
    %v456 = vld [vmem:[#allocation4] sm:$0xff]
    %v457 = vld [vmem:[#allocation4 + $0x8] sm:$0xff]
    %v458 = vld [vmem:[#allocation4 + $0x10] sm:$0xff]
    %v459 = vld [vmem:[#allocation4 + $0x18] sm:$0xff]
    %460 = vadd.xlane.f32.xlu0 %v456
    %v461 = vpop.xlane.xlu0 %460
    %462 = vadd.xlane.f32.xlu0 %v457
    %v463 = vpop.xlane.xlu0 %462
    %464 = vadd.xlane.f32.xlu0 %v458
    %v465 = vpop.xlane.xlu0 %464
    %466 = vadd.xlane.f32.xlu0 %v459
    %v467 = vpop.xlane.xlu0 %466
    %v468 = vlog2.pop %v437
    %v469 = vmul.f32 %v468, 0.6931472
    %v470 = vlog2.pop %v439
    %v471 = vmul.f32 %v470, 0.6931472
    %v472 = vlog2.pop %v441
    %v473 = vmul.f32 %v472, 0.6931472
    %v474 = vlog2.pop %v443
    %v475 = vmul.f32 %v474, 0.6931472
    %v476 = vmul.f32 %v461, %v469
    %v477 = vmul.f32 %v463, %v471
    %v478 = vmul.f32 %v465, %v473
    %v479 = vmul.f32 %v467, %v475
    %v480 = vsub.f32 %v449, %v476
    %v481 = vsub.f32 %v451, %v477
    %v482 = vsub.f32 %v453, %v478
    %v483 = vsub.f32 %v455, %v479
    %v484 = vrcp.pop %v461
    %v485 = vmul.f32 %v480, %v484
    %v486 = vrcp.pop %v463
    %v487 = vmul.f32 %v481, %v486
    %v488 = vrcp.pop %v465
    %v489 = vmul.f32 %v482, %v488
    %v490 = vrcp.pop %v467
    %v491 = vmul.f32 %v483, %v490
    %v492 = vmul.f32 %v485, -1.0
    %v493 = vmul.f32 %v487, -1.0
    %v494 = vmul.f32 %v489, -1.0
    %v495 = vmul.f32 %v491, -1.0
    %vm496 = vcmask 7168
    %497 = vst.msk [vmem:[%s6] sm:$0xff] %vm496, %v492
    %498 = vst.msk [vmem:[%s6 + $0x8] sm:$0xff] %vm496, %v493
    %499 = vst.msk [vmem:[%s6 + $0x10] sm:$0xff] %vm496, %v494
    %500 = vst.msk [vmem:[%s6 + $0x18] sm:$0xff] %vm496, %v495
  $region41: #{tpu_custom_call.1} parent=0 // pred_fallthru
    _
  // Predicated region
  $region42: #{tpu_custom_call.1} parent=0 // pred_check
    _
  $region43: #{tpu_custom_call.1} parent=0 // pred_check_branch
    %502 = sbr.rel (0) target = $region45
  $region44: #{tpu_custom_call.1} parent=0 // pred_region
    _
  $region45: #{tpu_custom_call.1} parent=0 // pred_fallthru
    _
  // Predicated region
  $region46: #{tpu_custom_call.1} parent=0 // pred_check
    _
  $region47: #{tpu_custom_call.1} parent=0 // pred_check_branch
    %504 = sbr.rel (0) target = $region49
  $region48: #{tpu_custom_call.1} parent=0 // pred_region
    _
  $region49: #{tpu_custom_call.1} parent=0 // pred_fallthru
    _

</llo_original>
